<compile_context>
chip_gen: v7x
topology: tpu7x:2x2x1
jax: 0.10.0
libtpu: 0.0.40
codegen_flags: <defaults>
</compile_context>

<pallas_src>
import jax
import jax.numpy as jnp
from jax.experimental import pallas as pl
from jax.experimental.pallas import tpu as pltpu

# Module dims from the PyTorch spec: Linear(image_size,100) -> (100,50) -> (50,10)
HIDDEN0 = 100
HIDDEN1 = 50
N_CLASSES = 10

N_PAD = 128        # lane-dense padded width for hidden/class dims
_NEG = -1e30       # bias for padded logit lanes: never wins the max, exp() == 0
_TB_MAX = 1024     # max batch-tile rows (~4 MiB/step VMEM incl. double buffers)


def _mlp_kernel(x_ref, w0_ref, b0_ref, w1_ref, b1_ref, w2_ref, b2_ref, o_ref):
    # x is streamed in native f32; cast to bf16 in-kernel for the MXU.
    x = x_ref[...].astype(jnp.bfloat16)                       # [TB, image_size]

    # fc0 + ReLU  (bf16 MXU matmul, f32 accumulate, f32 bias)
    h0 = jnp.dot(x, w0_ref[...], preferred_element_type=jnp.float32) + b0_ref[...]
    h0 = jnp.maximum(h0, 0.0).astype(jnp.bfloat16)            # [TB, 128]

    # fc1 + ReLU
    h1 = jnp.dot(h0, w1_ref[...], preferred_element_type=jnp.float32) + b1_ref[...]
    h1 = jnp.maximum(h1, 0.0).astype(jnp.bfloat16)            # [TB, 128]

    # fc2  (padded classes have bias -1e30 -> never win the max, exp() == 0)
    logits = jnp.dot(h1, w2_ref[...], preferred_element_type=jnp.float32) + b2_ref[...]

    # log_softmax over the class dim (numerically stable, f32)
    m = jnp.max(logits, axis=-1, keepdims=True)
    shifted = logits - m
    lse = jnp.log(jnp.sum(jnp.exp(shifted), axis=-1, keepdims=True))
    o_ref[...] = shifted - lse                                 # [TB, 128] f32


def _round_up(n, m):
    return ((n + m - 1) // m) * m


def _pad2(a, rows, cols, fill=0.0):
    r, c = a.shape
    return jnp.pad(a, ((0, rows - r), (0, cols - c)), constant_values=fill)


def prepare_params(params):
    """One-time padding/casting of the weights (hoisted out of the forward)."""
    image_size = params["w0"].shape[0]
    return dict(
        w0=_pad2(params["w0"], image_size, N_PAD).astype(jnp.bfloat16),
        b0=_pad2(params["b0"], 1, N_PAD).astype(jnp.float32),
        w1=_pad2(params["w1"], N_PAD, N_PAD).astype(jnp.bfloat16),
        b1=_pad2(params["b1"], 1, N_PAD).astype(jnp.float32),
        w2=_pad2(params["w2"], N_PAD, N_PAD).astype(jnp.bfloat16),
        b2=_pad2(params["b2"], 1, N_PAD, fill=_NEG).astype(jnp.float32),
    )


def model_a_forward(x, padded_params):
    """x: [B, C, H, W] or [B, image_size]; padded_params: from prepare_params."""
    w0p, b0p = padded_params["w0"], padded_params["b0"]
    w1p, b1p = padded_params["w1"], padded_params["b1"]
    w2p, b2p = padded_params["w2"], padded_params["b2"]
    image_size = w0p.shape[0]

    # == x.view(-1, image_size); streamed in native f32 (no wrapper-side cast/pad).
    x2d = x.reshape(-1, image_size).astype(jnp.float32)
    B = x2d.shape[0]

    # Batch tile selection:
    #  - tiny batches: a single block equal to the array (always a legal block shape)
    #  - otherwise: >= 2 tiles when possible (v7x megacore), multiple-of-16 rows,
    #    capped at _TB_MAX; ragged tails become a partial last block (cdiv grid).
    if B <= 16:
        TB = B
    else:
        TB = min(_TB_MAX, _round_up(pl.cdiv(B, 2), 16))
    num_tiles = pl.cdiv(B, TB)

    # Weights/biases: same block every step -> kept resident in VMEM.
    def resident(shape):
        return pl.BlockSpec(shape, lambda i: (0, 0))

    flops = 2 * B * (image_size * N_PAD + 2 * N_PAD * N_PAD)
    bytes_accessed = (B * image_size * 4                        # x (f32, streamed)
                      + (image_size + 2 * N_PAD) * N_PAD * 2    # weights (bf16)
                      + 3 * N_PAD * 4                           # biases (f32)
                      + B * N_PAD * 4)                          # output (f32)

    out = pl.pallas_call(
        _mlp_kernel,
        out_shape=jax.ShapeDtypeStruct((B, N_PAD), jnp.float32),
        grid=(num_tiles,),
        in_specs=[
            pl.BlockSpec((TB, image_size), lambda i: (i, 0)),   # streamed x tiles
            resident(w0p.shape), resident(b0p.shape),
            resident(w1p.shape), resident(b1p.shape),
            resident(w2p.shape), resident(b2p.shape),
        ],
        out_specs=pl.BlockSpec((TB, N_PAD), lambda i: (i, 0)),
        compiler_params=pltpu.CompilerParams(
            dimension_semantics=("parallel",)),
        cost_estimate=pl.CostEstimate(
            flops=flops,
            transcendentals=B * N_PAD,
            bytes_accessed=bytes_accessed),
    )(x2d, w0p, b0p, w1p, b1p, w2p, b2p)

    # Keep the module's (B, 10) interface. Consumers able to index lanes 0..9 of
    # the padded (B, 128) output directly can skip this slice to save one pass.
    return out[:, :N_CLASSES]


def init_params(key, image_size):
    """Deterministic init matching nn.Linear shapes (weights stored transposed [in, out])."""
    ks = jax.random.split(key, 6)

    def linear(kw, kb, fan_in, fan_out):
        bound = 1.0 / jnp.sqrt(fan_in)
        w = jax.random.uniform(kw, (fan_in, fan_out), jnp.float32, -bound, bound)
        b = jax.random.uniform(kb, (1, fan_out), jnp.float32, -bound, bound)
        return w, b

    w0, b0 = linear(ks[0], ks[1], image_size, HIDDEN0)
    w1, b1 = linear(ks[2], ks[3], HIDDEN0, HIDDEN1)
    w2, b2 = linear(ks[4], ks[5], HIDDEN1, N_CLASSES)
    return dict(w0=w0, b0=b0, w1=w1, b1=b1, w2=w2, b2=b2)


def _reference(x, params):
    """Pure-f32 JAX reference matching the PyTorch module."""
    image_size = params["w0"].shape[0]
    x = x.reshape(-1, image_size).astype(jnp.float32)
    h0 = jax.nn.relu(x @ params["w0"] + params["b0"])
    h1 = jax.nn.relu(h0 @ params["w1"] + params["b1"])
    logits = h1 @ params["w2"] + params["b2"]
    return jax.nn.log_softmax(logits, axis=1)


if __name__ == "__main__":
    key = jax.random.PRNGKey(0)
    k_x, k_p = jax.random.split(key)

    B, C, H, W = 8, 1, 16, 16          # image_size = 256
    image_size = C * H * W
    x = jax.random.normal(k_x, (B, C, H, W), dtype=jnp.float32)
    params = init_params(k_p, image_size)
    padded_params = prepare_params(params)     # one-time pad/cast of weights

    fwd = jax.jit(model_a_forward)
    out = jax.block_until_ready(fwd(x, padded_params))

    ref = _reference(x, params)
    assert out.shape == (B, N_CLASSES), out.shape

    # Matmul inputs are bf16 (f32 accumulate) -> compare with a bf16-appropriate tolerance.
    max_err = float(jnp.max(jnp.abs(out - ref)))
    assert max_err < 5e-2, f"mismatch vs reference: max abs err {max_err}"
    # log-probabilities must still normalize per row (output computed in f32).
    norm_err = float(jnp.max(jnp.abs(jnp.sum(jnp.exp(out), axis=1) - 1.0)))
    assert norm_err < 1e-3, f"log_softmax rows not normalized: {norm_err}"

    print("KERNEL_OK")
</pallas_src>

<mosaic_0001>
module attributes {stable_mosaic.version = 11 : i64} {
  func.func @_mlp_kernel(%arg0: i32, %arg1: memref<8x256xf32, #tpu.memory_space<vmem>>, %arg2: memref<256x128xbf16, #tpu.memory_space<vmem>>, %arg3: memref<1x128xf32, #tpu.memory_space<vmem>>, %arg4: memref<128x128xbf16, #tpu.memory_space<vmem>>, %arg5: memref<1x128xf32, #tpu.memory_space<vmem>>, %arg6: memref<128x128xbf16, #tpu.memory_space<vmem>>, %arg7: memref<1x128xf32, #tpu.memory_space<vmem>>, %arg8: memref<8x128xf32, #tpu.memory_space<vmem>>) attributes {dimension_semantics = [#tpu.dimension_semantics<parallel>], iteration_bounds = array<i64: 1>, scalar_prefetch = 0 : i64, scratch_operands = 0 : i64, tpu.core_type = #tpu.core_type<tc>, window_params = [{transform_indices = @transform_0, window_bounds = array<i64: 8, 256>}, {pipeline_mode = #tpu.pipeline_mode<synchronous>, transform_indices = @transform_1, window_bounds = array<i64: 256, 128>}, {pipeline_mode = #tpu.pipeline_mode<synchronous>, transform_indices = @transform_2, window_bounds = array<i64: 1, 128>}, {pipeline_mode = #tpu.pipeline_mode<synchronous>, transform_indices = @transform_3, window_bounds = array<i64: 128, 128>}, {pipeline_mode = #tpu.pipeline_mode<synchronous>, transform_indices = @transform_4, window_bounds = array<i64: 1, 128>}, {pipeline_mode = #tpu.pipeline_mode<synchronous>, transform_indices = @transform_5, window_bounds = array<i64: 128, 128>}, {pipeline_mode = #tpu.pipeline_mode<synchronous>, transform_indices = @transform_6, window_bounds = array<i64: 1, 128>}, {transform_indices = @transform_7, window_bounds = array<i64: 8, 128>}]} {
    %c0 = arith.constant 0 : index
    %c0_0 = arith.constant 0 : index
    %0 = vector.load %arg1[%c0, %c0_0] : memref<8x256xf32, #tpu.memory_space<vmem>>, vector<8x256xf32>
    %1 = arith.truncf %0 : vector<8x256xf32> to vector<8x256xbf16>
    %c0_1 = arith.constant 0 : index
    %c0_2 = arith.constant 0 : index
    %2 = vector.load %arg2[%c0_1, %c0_2] : memref<256x128xbf16, #tpu.memory_space<vmem>>, vector<256x128xbf16>
    %cst = arith.constant dense<0.000000e+00> : vector<8x128xf32>
    %3 = tpu.matmul %1, %2, %cst {dimension_numbers = #tpu.dot_dimension_numbers<[1], [0], [0], [1], [0, 0, 1, 1], [], []>} : vector<8x256xbf16>, vector<256x128xbf16>, vector<8x128xf32> -> vector<8x128xf32>
    %c0_3 = arith.constant 0 : index
    %c0_4 = arith.constant 0 : index
    %4 = vector.load %arg3[%c0_3, %c0_4] : memref<1x128xf32, #tpu.memory_space<vmem>>, vector<1x128xf32>
    %5 = vector.broadcast %4 : vector<1x128xf32> to vector<8x128xf32>
    %6 = arith.addf %3, %5 : vector<8x128xf32>
    %cst_5 = arith.constant 0.000000e+00 : f32
    %7 = vector.broadcast %cst_5 : f32 to vector<8x128xf32>
    %8 = arith.maximumf %6, %7 : vector<8x128xf32>
    %9 = arith.truncf %8 : vector<8x128xf32> to vector<8x128xbf16>
    %c0_6 = arith.constant 0 : index
    %c0_7 = arith.constant 0 : index
    %10 = vector.load %arg4[%c0_6, %c0_7] : memref<128x128xbf16, #tpu.memory_space<vmem>>, vector<128x128xbf16>
    %cst_8 = arith.constant dense<0.000000e+00> : vector<8x128xf32>
    %11 = tpu.matmul %9, %10, %cst_8 {dimension_numbers = #tpu.dot_dimension_numbers<[1], [0], [0], [1], [0, 0, 1, 1], [], []>} : vector<8x128xbf16>, vector<128x128xbf16>, vector<8x128xf32> -> vector<8x128xf32>
    %c0_9 = arith.constant 0 : index
    %c0_10 = arith.constant 0 : index
    %12 = vector.load %arg5[%c0_9, %c0_10] : memref<1x128xf32, #tpu.memory_space<vmem>>, vector<1x128xf32>
    %13 = vector.broadcast %12 : vector<1x128xf32> to vector<8x128xf32>
    %14 = arith.addf %11, %13 : vector<8x128xf32>
    %cst_11 = arith.constant 0.000000e+00 : f32
    %15 = vector.broadcast %cst_11 : f32 to vector<8x128xf32>
    %16 = arith.maximumf %14, %15 : vector<8x128xf32>
    %17 = arith.truncf %16 : vector<8x128xf32> to vector<8x128xbf16>
    %c0_12 = arith.constant 0 : index
    %c0_13 = arith.constant 0 : index
    %18 = vector.load %arg6[%c0_12, %c0_13] : memref<128x128xbf16, #tpu.memory_space<vmem>>, vector<128x128xbf16>
    %cst_14 = arith.constant dense<0.000000e+00> : vector<8x128xf32>
    %19 = tpu.matmul %17, %18, %cst_14 {dimension_numbers = #tpu.dot_dimension_numbers<[1], [0], [0], [1], [0, 0, 1, 1], [], []>} : vector<8x128xbf16>, vector<128x128xbf16>, vector<8x128xf32> -> vector<8x128xf32>
    %c0_15 = arith.constant 0 : index
    %c0_16 = arith.constant 0 : index
    %20 = vector.load %arg7[%c0_15, %c0_16] : memref<1x128xf32, #tpu.memory_space<vmem>>, vector<1x128xf32>
    %21 = vector.broadcast %20 : vector<1x128xf32> to vector<8x128xf32>
    %22 = arith.addf %19, %21 : vector<8x128xf32>
    %cst_17 = arith.constant dense<0xFF800000> : vector<8xf32>
    %23 = vector.multi_reduction <maximumf>, %22, %cst_17 [1] : vector<8x128xf32> to vector<8xf32>
    %24 = vector.shape_cast %23 : vector<8xf32> to vector<8x1xf32>
    %25 = vector.broadcast %24 : vector<8x1xf32> to vector<8x128xf32>
    %26 = arith.subf %22, %25 : vector<8x128xf32>
    %27 = math.exp %26 : vector<8x128xf32>
    %cst_18 = arith.constant dense<0.000000e+00> : vector<8xf32>
    %28 = vector.multi_reduction <add>, %27, %cst_18 [1] : vector<8x128xf32> to vector<8xf32>
    %29 = vector.shape_cast %28 : vector<8xf32> to vector<8x1xf32>
    %30 = math.log %29 : vector<8x1xf32>
    %31 = vector.broadcast %30 : vector<8x1xf32> to vector<8x128xf32>
    %32 = arith.subf %26, %31 : vector<8x128xf32>
    %c0_19 = arith.constant 0 : index
    %c0_20 = arith.constant 0 : index
    %33 = vector.load %arg8[%c0_19, %c0_20] : memref<8x128xf32, #tpu.memory_space<vmem>>, vector<8x128xf32>
    tpu.vector_store %arg8[%c0_19, %c0_20], %32 {strides = array<i32>} : memref<8x128xf32, #tpu.memory_space<vmem>>, vector<8x128xf32>,
    return
  }
  func.func @transform_0(%arg0: i32) -> (i32, i32) {
    %c0_i32 = arith.constant 0 : i32
    %c0_i32_0 = arith.constant 0 : i32
    return %arg0, %c0_i32 : i32, i32
  }
  func.func @transform_1(%arg0: i32) -> (i32, i32) {
    %c0_i32 = arith.constant 0 : i32
    %c0_i32_0 = arith.constant 0 : i32
    %c0_i32_1 = arith.constant 0 : i32
    return %c0_i32, %c0_i32_0 : i32, i32
  }
  func.func @transform_2(%arg0: i32) -> (i32, i32) {
    %c0_i32 = arith.constant 0 : i32
    %c0_i32_0 = arith.constant 0 : i32
    %c0_i32_1 = arith.constant 0 : i32
    return %c0_i32, %c0_i32_0 : i32, i32
  }
  func.func @transform_3(%arg0: i32) -> (i32, i32) {
    %c0_i32 = arith.constant 0 : i32
    %c0_i32_0 = arith.constant 0 : i32
    %c0_i32_1 = arith.constant 0 : i32
    return %c0_i32, %c0_i32_0 : i32, i32
  }
  func.func @transform_4(%arg0: i32) -> (i32, i32) {
    %c0_i32 = arith.constant 0 : i32
    %c0_i32_0 = arith.constant 0 : i32
    %c0_i32_1 = arith.constant 0 : i32
    return %c0_i32, %c0_i32_0 : i32, i32
  }
  func.func @transform_5(%arg0: i32) -> (i32, i32) {
    %c0_i32 = arith.constant 0 : i32
    %c0_i32_0 = arith.constant 0 : i32
    %c0_i32_1 = arith.constant 0 : i32
    return %c0_i32, %c0_i32_0 : i32, i32
  }
  func.func @transform_6(%arg0: i32) -> (i32, i32) {
    %c0_i32 = arith.constant 0 : i32
    %c0_i32_0 = arith.constant 0 : i32
    %c0_i32_1 = arith.constant 0 : i32
    return %c0_i32, %c0_i32_0 : i32, i32
  }
  func.func @transform_7(%arg0: i32) -> (i32, i32) {
    %c0_i32 = arith.constant 0 : i32
    %c0_i32_0 = arith.constant 0 : i32
    return %arg0, %c0_i32 : i32, i32
  }
}

</mosaic_0001>

<llo_original>
// kernel: model_a_forward.1
$region0: #{model_a_forward.1}
  #allocation0 [shape = 'u32[]', space=smem, size = 0x4, offset = 0x4, fixed_abs, tag = 'smem constant byte address 0x4 - core index']
  #allocation1 [shape = 'u32[144,128]{1,0:T(1,128)}', space=vmem, size = 0x12000, scoped, tag = 'internal scratch']
  %s0 = inlined_call_operand.vmem [shape: f32[8,256], index: 0, kind: input, shape index: {}]
  %s1 = inlined_call_operand.vmem [shape: bf16[256,128], index: 1, kind: input, shape index: {}]
  %s2 = inlined_call_operand.vmem [shape: f32[1,128], index: 2, kind: input, shape index: {}]
  %s3 = inlined_call_operand.hbm [shape: bf16[128,128], index: 3, kind: input, shape index: {}]
  %s4 = inlined_call_operand.vmem [shape: f32[1,128], index: 4, kind: input, shape index: {}]
  %s5 = inlined_call_operand.hbm [shape: bf16[128,128], index: 5, kind: input, shape index: {}]
  %s6 = inlined_call_operand.vmem [shape: f32[1,128], index: 6, kind: input, shape index: {}]
  %s7 = inlined_call_operand.hbm [shape: f32[8,128], index: 7, kind: output, shape index: {}]
  %s8 = sld [smem:[#allocation0]]
  $region46: #{model_a_forward.1} parent=0
    _
  %s10 = ssub.s32 1, %s8
  %s11 = scalar_select 0, %s10, %s8
  $region1: #{model_a_forward.1} parent=0
    #allocation2 [shape = 'u8[32768]{0}', space=vmem, size = 0x8000, scoped, tag = 'input window, operand 3, single buffered']
    #allocation3 [shape = 's32[1]{0}', space=sflag, size = 0x4, scoped, tag = 'scoped memory for model_a_forward.1']
    #allocation4 [shape = 's32[1]{0}', space=sflag, size = 0x4, scoped, tag = 'scoped memory for model_a_forward.1']
    #allocation5 [shape = 'u8[32768]{0}', space=vmem, size = 0x8000, scoped, tag = 'input window, operand 5, single buffered']
    #allocation6 [shape = 's32[1]{0}', space=sflag, size = 0x4, scoped, tag = 'scoped memory for model_a_forward.1']
    #allocation7 [shape = 'u8[4096]{0}', space=vmem, size = 0x1000, scoped, tag = 'output window, operand 0, single buffered']
    %12 = vsyncpa [#allocation3], 0
    %13 = vsyncpa [#allocation6], 0
    %14 = vsyncpa [#allocation4], 0
    // Predicated region
    $region2: #{model_a_forward.1} parent=1 // pred_check
      _
    $region3: #{model_a_forward.1} parent=1 // pred_check_branch
      %16 = sbr.rel (0) target = $region5
    $region4: #{model_a_forward.1} parent=1 // pred_region
      _
    $region5: #{model_a_forward.1} parent=1 // pred_fallthru
      _
    // Predicated region
    $region6: #{model_a_forward.1} parent=1 // pred_check
      _
    $region7: #{model_a_forward.1} parent=1 // pred_check_branch
      %18 = sbr.rel (0) target = $region9
    $region8: #{model_a_forward.1} parent=1 // pred_region
      _
    $region9: #{model_a_forward.1} parent=1 // pred_fallthru
      _
    // Predicated region
    $region10: #{model_a_forward.1} parent=1 // pred_check
      _
    $region11: #{model_a_forward.1} parent=1 // pred_check_branch
      %20 = sbr.rel (0) target = $region13
    $region12: #{model_a_forward.1} parent=1 // pred_region
      _
    $region13: #{model_a_forward.1} parent=1 // pred_fallthru
      _
    // Predicated region
    $region14: #{model_a_forward.1} parent=1 // pred_check
      _
    $region15: #{model_a_forward.1} parent=1 // pred_check_branch
      %22 = sbr.rel (0) target = $region17
    $region16: #{model_a_forward.1} parent=1 // pred_region
      %s24 = ssub.s32 1024, 1024
      %25 = vsyncadd [#allocation3], %s24
      %s26 = sshll.u32 [#allocation2], 4
      %s27 = int_to_ptr.vmem [resolvable:$true] %s26
      %32 = dma.hbm_to_vmem [thread:$0]  %s3, 1024, %s27, [#allocation3], 64, 64, 4
    $region17: #{model_a_forward.1} parent=1 // pred_fallthru
      _
    // Predicated region
    $region18: #{model_a_forward.1} parent=1 // pred_check
      _
    $region19: #{model_a_forward.1} parent=1 // pred_check_branch
      %34 = sbr.rel (0) target = $region21
    $region20: #{model_a_forward.1} parent=1 // pred_region
      _
    $region21: #{model_a_forward.1} parent=1 // pred_fallthru
      _
    // Predicated region
    $region22: #{model_a_forward.1} parent=1 // pred_check
      _
    $region23: #{model_a_forward.1} parent=1 // pred_check_branch
      %36 = sbr.rel (0) target = $region25
    $region24: #{model_a_forward.1} parent=1 // pred_region
      %s38 = ssub.s32 1024, 1024
      %39 = vsyncadd [#allocation6], %s38
      %s40 = sshll.u32 [#allocation5], 4
      %s41 = int_to_ptr.vmem [resolvable:$true] %s40
      %46 = dma.hbm_to_vmem [thread:$0]  %s5, 1024, %s41, [#allocation6], 64, 64, 4
    $region25: #{model_a_forward.1} parent=1 // pred_fallthru
      _
    // Predicated region
    $region26: #{model_a_forward.1} parent=1 // pred_check
      _
    $region27: #{model_a_forward.1} parent=1 // pred_check_branch
      %48 = sbr.rel (0) target = $region29
    $region28: #{model_a_forward.1} parent=1 // pred_region
      _
    $region29: #{model_a_forward.1} parent=1 // pred_fallthru
      _
    // Predicated region
    $region30: #{model_a_forward.1} parent=1 // pred_check
      _
    $region31: #{model_a_forward.1} parent=1 // pred_check_branch
      %50 = sbr.rel (0) target = $region33
    $region32: #{model_a_forward.1} parent=1 // pred_region
      %51 = dma.done [#allocation3], 1024
    $region33: #{model_a_forward.1} parent=1 // pred_fallthru
      _
    // Predicated region
    $region34: #{model_a_forward.1} parent=1 // pred_check
      _
    $region35: #{model_a_forward.1} parent=1 // pred_check_branch
      %53 = sbr.rel (0) target = $region37
    $region36: #{model_a_forward.1} parent=1 // pred_region
      %54 = dma.done [#allocation6], 1024
    $region37: #{model_a_forward.1} parent=1 // pred_fallthru
      _
    %v56 = vld [vmem:[%s0] sm:$0xff]
    %v57 = vld [vmem:[%s0 + $0x8] sm:$0xff]
    %v58 = vpack.c.bf16 %v56, %v56
    %v59 = vpack.c.bf16 %v57, %v57
    %v60 = vld [vmem:[%s1] sm:$0xf]
    %v61 = vld [vmem:[%s1 + $0x4] sm:$0xf]
    %v62 = vld [vmem:[%s1 + $0x8] sm:$0xf]
    %v63 = vld [vmem:[%s1 + $0xc] sm:$0xf]
    %v64 = vld [vmem:[%s1 + $0x10] sm:$0xf]
    %v65 = vld [vmem:[%s1 + $0x14] sm:$0xf]
    %v66 = vld [vmem:[%s1 + $0x18] sm:$0xf]
    %v67 = vld [vmem:[%s1 + $0x1c] sm:$0xf]
    %v68 = vld [vmem:[%s1 + $0x20] sm:$0xf]
    %v69 = vld [vmem:[%s1 + $0x24] sm:$0xf]
    %v70 = vld [vmem:[%s1 + $0x28] sm:$0xf]
    %v71 = vld [vmem:[%s1 + $0x2c] sm:$0xf]
    %v72 = vld [vmem:[%s1 + $0x30] sm:$0xf]
    %v73 = vld [vmem:[%s1 + $0x34] sm:$0xf]
    %v74 = vld [vmem:[%s1 + $0x38] sm:$0xf]
    %v75 = vld [vmem:[%s1 + $0x3c] sm:$0xf]
    %v76 = vld [vmem:[%s1 + $0x40] sm:$0xf]
    %v77 = vld [vmem:[%s1 + $0x44] sm:$0xf]
    %v78 = vld [vmem:[%s1 + $0x48] sm:$0xf]
    %v79 = vld [vmem:[%s1 + $0x4c] sm:$0xf]
    %v80 = vld [vmem:[%s1 + $0x50] sm:$0xf]
    %v81 = vld [vmem:[%s1 + $0x54] sm:$0xf]
    %v82 = vld [vmem:[%s1 + $0x58] sm:$0xf]
    %v83 = vld [vmem:[%s1 + $0x5c] sm:$0xf]
    %v84 = vld [vmem:[%s1 + $0x60] sm:$0xf]
    %v85 = vld [vmem:[%s1 + $0x64] sm:$0xf]
    %v86 = vld [vmem:[%s1 + $0x68] sm:$0xf]
    %v87 = vld [vmem:[%s1 + $0x6c] sm:$0xf]
    %v88 = vld [vmem:[%s1 + $0x70] sm:$0xf]
    %v89 = vld [vmem:[%s1 + $0x74] sm:$0xf]
    %v90 = vld [vmem:[%s1 + $0x78] sm:$0xf]
    %v91 = vld [vmem:[%s1 + $0x7c] sm:$0xf]
    %v92 = vld [vmem:[%s2] sm:$0x1]
    %v94 = vlaneseq
    %v95 = vshrl.u32 %v94, 7
    %v96 = vsub.s32 0, %v95
    %v97 = vrot.slane %v92, %v96
    %v131 = vunpack.c.l.b16 %v60
    %v132 = vunpack.c.l.b16 %v61
    %v133 = vunpack.c.l.b16 %v62
    %v134 = vunpack.c.l.b16 %v63
    %v135 = vunpack.c.l.b16 %v64
    %v136 = vunpack.c.l.b16 %v65
    %v137 = vunpack.c.l.b16 %v66
    %v138 = vunpack.c.l.b16 %v67
    %v139 = vunpack.c.l.b16 %v68
    %v140 = vunpack.c.l.b16 %v69
    %v141 = vunpack.c.l.b16 %v70
    %v142 = vunpack.c.l.b16 %v71
    %v143 = vunpack.c.l.b16 %v72
    %v144 = vunpack.c.l.b16 %v73
    %v145 = vunpack.c.l.b16 %v74
    %v146 = vunpack.c.l.b16 %v75
    %v147 = vunpack.c.l.b16 %v76
    %v148 = vunpack.c.l.b16 %v77
    %v149 = vunpack.c.l.b16 %v78
    %v150 = vunpack.c.l.b16 %v79
    %v151 = vunpack.c.l.b16 %v80
    %v152 = vunpack.c.l.b16 %v81
    %v153 = vunpack.c.l.b16 %v82
    %v154 = vunpack.c.l.b16 %v83
    %v155 = vunpack.c.l.b16 %v84
    %v156 = vunpack.c.l.b16 %v85
    %v157 = vunpack.c.l.b16 %v86
    %v158 = vunpack.c.l.b16 %v87
    %v159 = vunpack.c.l.b16 %v88
    %v160 = vunpack.c.l.b16 %v89
    %v161 = vunpack.c.l.b16 %v90
    %v162 = vunpack.c.l.b16 %v91
    %v163 = vpack.c.b16 %v132, %v131
    %v164 = vpack.c.b16 %v134, %v133
    %v165 = vpack.c.b16 %v136, %v135
    %v166 = vpack.c.b16 %v138, %v137
    %v167 = vpack.c.b16 %v140, %v139
    %v168 = vpack.c.b16 %v142, %v141
    %v169 = vpack.c.b16 %v144, %v143
    %v170 = vpack.c.b16 %v146, %v145
    %v171 = vpack.c.b16 %v148, %v147
    %v172 = vpack.c.b16 %v150, %v149
    %v173 = vpack.c.b16 %v152, %v151
    %v174 = vpack.c.b16 %v154, %v153
    %v175 = vpack.c.b16 %v156, %v155
    %v176 = vpack.c.b16 %v158, %v157
    %v177 = vpack.c.b16 %v160, %v159
    %v178 = vpack.c.b16 %v162, %v161
    %195 = vmatprep.subr.bf16.mxu0 0
    %196 = vmatpush1.bf16.msra.mxu0 %v163
    %197 = vmatprep.subr.bf16.mxu0 0
    %198 = vmatpush1.bf16.msra.mxu0 %v164
    %199 = vmatprep.subr.bf16.mxu0 0
    %200 = vmatpush1.bf16.msra.mxu0 %v165
    %201 = vmatprep.subr.bf16.mxu0 0
    %202 = vmatpush1.bf16.msra.mxu0 %v166
    %203 = vmatprep.subr.bf16.mxu0 0
    %204 = vmatpush1.bf16.msra.mxu0 %v167
    %205 = vmatprep.subr.bf16.mxu0 0
    %206 = vmatpush1.bf16.msra.mxu0 %v168
    %207 = vmatprep.subr.bf16.mxu0 0
    %208 = vmatpush1.bf16.msra.mxu0 %v169
    %209 = vmatprep.subr.bf16.mxu0 0
    %210 = vmatpush1.bf16.msra.mxu0 %v170
    %211 = vmatprep.subr.bf16.mxu0 0
    %212 = vmatpush1.bf16.msra.mxu0 %v171
    %213 = vmatprep.subr.bf16.mxu0 0
    %214 = vmatpush1.bf16.msra.mxu0 %v172
    %215 = vmatprep.subr.bf16.mxu0 0
    %216 = vmatpush1.bf16.msra.mxu0 %v173
    %217 = vmatprep.subr.bf16.mxu0 0
    %218 = vmatpush1.bf16.msra.mxu0 %v174
    %219 = vmatprep.subr.bf16.mxu0 0
    %220 = vmatpush1.bf16.msra.mxu0 %v175
    %221 = vmatprep.subr.bf16.mxu0 0
    %222 = vmatpush1.bf16.msra.mxu0 %v176
    %223 = vmatprep.subr.bf16.mxu0 0
    %224 = vmatpush1.bf16.msra.mxu0 %v177
    %225 = vmatprep.subr.bf16.mxu0 0
    %226 = vmatpush1.bf16.msra.mxu0 %v178
    %227 = vmatprep.mubr.bf16.mxu0 %v59
    %228 = vmatmul.mubr.bf16.gmra.mrb[0].mxu0 %v58
    %v229 = vpop.f32.mrb[0].mxu0
    %v230 = vadd.f32 %v97, %v229
    %v231 = vpop.f32.mrb[0].mxu0
    %v232 = vpop.f32.mrb[0].mxu0
    %v233 = vpop.f32.mrb[0].mxu0
    %234 = vdwg.mxu0
    %v235 = vmax.f32 %v230, 0.0
    %v236 = vpack.c.bf16 %v235, %v235
    %v237 = vld [vmem:[#allocation2] sm:$0xf]
    %v238 = vld [vmem:[#allocation2 + $0x4] sm:$0xf]
    %v239 = vld [vmem:[#allocation2 + $0x8] sm:$0xf]
    %v240 = vld [vmem:[#allocation2 + $0xc] sm:$0xf]
    %v241 = vld [vmem:[#allocation2 + $0x10] sm:$0xf]
    %v242 = vld [vmem:[#allocation2 + $0x14] sm:$0xf]
    %v243 = vld [vmem:[#allocation2 + $0x18] sm:$0xf]
    %v244 = vld [vmem:[#allocation2 + $0x1c] sm:$0xf]
    %v245 = vld [vmem:[#allocation2 + $0x20] sm:$0xf]
    %v246 = vld [vmem:[#allocation2 + $0x24] sm:$0xf]
    %v247 = vld [vmem:[#allocation2 + $0x28] sm:$0xf]
    %v248 = vld [vmem:[#allocation2 + $0x2c] sm:$0xf]
    %v249 = vld [vmem:[#allocation2 + $0x30] sm:$0xf]
    %v250 = vld [vmem:[#allocation2 + $0x34] sm:$0xf]
    %v251 = vld [vmem:[#allocation2 + $0x38] sm:$0xf]
    %v252 = vld [vmem:[#allocation2 + $0x3c] sm:$0xf]
    %v253 = vld [vmem:[%s4] sm:$0x1]
    %v255 = vlaneseq
    %v256 = vshrl.u32 %v255, 7
    %v257 = vsub.s32 0, %v256
    %v258 = vrot.slane %v253, %v257
    %v276 = vunpack.c.l.b16 %v237
    %v277 = vunpack.c.l.b16 %v238
    %v278 = vunpack.c.l.b16 %v239
    %v279 = vunpack.c.l.b16 %v240
    %v280 = vunpack.c.l.b16 %v241
    %v281 = vunpack.c.l.b16 %v242
    %v282 = vunpack.c.l.b16 %v243
    %v283 = vunpack.c.l.b16 %v244
    %v284 = vunpack.c.l.b16 %v245
    %v285 = vunpack.c.l.b16 %v246
    %v286 = vunpack.c.l.b16 %v247
    %v287 = vunpack.c.l.b16 %v248
    %v288 = vunpack.c.l.b16 %v249
    %v289 = vunpack.c.l.b16 %v250
    %v290 = vunpack.c.l.b16 %v251
    %v291 = vunpack.c.l.b16 %v252
    %v292 = vpack.c.b16 %v277, %v276
    %v293 = vpack.c.b16 %v279, %v278
    %v294 = vpack.c.b16 %v281, %v280
    %v295 = vpack.c.b16 %v283, %v282
    %v296 = vpack.c.b16 %v285, %v284
    %v297 = vpack.c.b16 %v287, %v286
    %v298 = vpack.c.b16 %v289, %v288
    %v299 = vpack.c.b16 %v291, %v290
    %308 = vmatprep.subr.bf16.mxu0 0
    %309 = vmatpush1.bf16.msra.mxu0 %v292
    %310 = vmatprep.subr.bf16.mxu0 0
    %311 = vmatpush1.bf16.msra.mxu0 %v293
    %312 = vmatprep.subr.bf16.mxu0 0
    %313 = vmatpush1.bf16.msra.mxu0 %v294
    %314 = vmatprep.subr.bf16.mxu0 0
    %315 = vmatpush1.bf16.msra.mxu0 %v295
    %316 = vmatprep.subr.bf16.mxu0 0
    %317 = vmatpush1.bf16.msra.mxu0 %v296
    %318 = vmatprep.subr.bf16.mxu0 0
    %319 = vmatpush1.bf16.msra.mxu0 %v297
    %320 = vmatprep.subr.bf16.mxu0 0
    %321 = vmatpush1.bf16.msra.mxu0 %v298
    %322 = vmatprep.subr.bf16.mxu0 0
    %323 = vmatpush1.bf16.msra.mxu0 %v299
    %324 = vmatprep.subr.bf16.mxu0 0
    %325 = vmatpush1.bf16.msra.mxu0 0
    %326 = vmatprep.subr.bf16.mxu0 0
    %327 = vmatpush1.bf16.msra.mxu0 0
    %328 = vmatprep.subr.bf16.mxu0 0
    %329 = vmatpush1.bf16.msra.mxu0 0
    %330 = vmatprep.subr.bf16.mxu0 0
    %331 = vmatpush1.bf16.msra.mxu0 0
    %332 = vmatprep.subr.bf16.mxu0 0
    %333 = vmatpush1.bf16.msra.mxu0 0
    %334 = vmatprep.subr.bf16.mxu0 0
    %335 = vmatpush1.bf16.msra.mxu0 0
    %336 = vmatprep.subr.bf16.mxu0 0
    %337 = vmatpush1.bf16.msra.mxu0 0
    %338 = vmatprep.subr.bf16.mxu0 0
    %339 = vmatpush1.bf16.msra.mxu0 0
    %340 = vmatprep.mubr.bf16.mxu0 0
    %341 = vmatmul.mubr.bf16.gmra.mrb[0].mxu0 %v236
    %v342 = vpop.f32.mrb[0].mxu0
    %v343 = vadd.f32 %v258, %v342
    %v344 = vpop.f32.mrb[0].mxu0
    %v345 = vpop.f32.mrb[0].mxu0
    %v346 = vpop.f32.mrb[0].mxu0
    %347 = vdwg.mxu0
    %v348 = vmax.f32 %v343, 0.0
    %v349 = vpack.c.bf16 %v348, %v348
    %v350 = vld [vmem:[#allocation5] sm:$0xf]
    %v351 = vld [vmem:[#allocation5 + $0x4] sm:$0xf]
    %v352 = vld [vmem:[#allocation5 + $0x8] sm:$0xf]
    %v353 = vld [vmem:[#allocation5 + $0xc] sm:$0xf]
    %v354 = vld [vmem:[#allocation5 + $0x10] sm:$0xf]
    %v355 = vld [vmem:[#allocation5 + $0x14] sm:$0xf]
    %v356 = vld [vmem:[#allocation5 + $0x18] sm:$0xf]
    %v357 = vld [vmem:[#allocation5 + $0x1c] sm:$0xf]
    %v358 = vld [vmem:[#allocation5 + $0x20] sm:$0xf]
    %v359 = vld [vmem:[#allocation5 + $0x24] sm:$0xf]
    %v360 = vld [vmem:[#allocation5 + $0x28] sm:$0xf]
    %v361 = vld [vmem:[#allocation5 + $0x2c] sm:$0xf]
    %v362 = vld [vmem:[#allocation5 + $0x30] sm:$0xf]
    %v363 = vld [vmem:[#allocation5 + $0x34] sm:$0xf]
    %v364 = vld [vmem:[#allocation5 + $0x38] sm:$0xf]
    %v365 = vld [vmem:[#allocation5 + $0x3c] sm:$0xf]
    %v366 = vld [vmem:[%s6] sm:$0x1]
    %v368 = vlaneseq
    %v369 = vshrl.u32 %v368, 7
    %v370 = vsub.s32 0, %v369
    %v371 = vrot.slane %v366, %v370
    %v389 = vunpack.c.l.b16 %v350
    %v390 = vunpack.c.l.b16 %v351
    %v391 = vunpack.c.l.b16 %v352
    %v392 = vunpack.c.l.b16 %v353
    %v393 = vunpack.c.l.b16 %v354
    %v394 = vunpack.c.l.b16 %v355
    %v395 = vunpack.c.l.b16 %v356
    %v396 = vunpack.c.l.b16 %v357
    %v397 = vunpack.c.l.b16 %v358
    %v398 = vunpack.c.l.b16 %v359
    %v399 = vunpack.c.l.b16 %v360
    %v400 = vunpack.c.l.b16 %v361
    %v401 = vunpack.c.l.b16 %v362
    %v402 = vunpack.c.l.b16 %v363
    %v403 = vunpack.c.l.b16 %v364
    %v404 = vunpack.c.l.b16 %v365
    %v405 = vpack.c.b16 %v390, %v389
    %v406 = vpack.c.b16 %v392, %v391
    %v407 = vpack.c.b16 %v394, %v393
    %v408 = vpack.c.b16 %v396, %v395
    %v409 = vpack.c.b16 %v398, %v397
    %v410 = vpack.c.b16 %v400, %v399
    %v411 = vpack.c.b16 %v402, %v401
    %v412 = vpack.c.b16 %v404, %v403
    %421 = vmatprep.subr.bf16.mxu0 0
    %422 = vmatpush1.bf16.msra.mxu0 %v405
    %423 = vmatprep.subr.bf16.mxu0 0
    %424 = vmatpush1.bf16.msra.mxu0 %v406
    %425 = vmatprep.subr.bf16.mxu0 0
    %426 = vmatpush1.bf16.msra.mxu0 %v407
    %427 = vmatprep.subr.bf16.mxu0 0
    %428 = vmatpush1.bf16.msra.mxu0 %v408
    %429 = vmatprep.subr.bf16.mxu0 0
    %430 = vmatpush1.bf16.msra.mxu0 %v409
    %431 = vmatprep.subr.bf16.mxu0 0
    %432 = vmatpush1.bf16.msra.mxu0 %v410
    %433 = vmatprep.subr.bf16.mxu0 0
    %434 = vmatpush1.bf16.msra.mxu0 %v411
    %435 = vmatprep.subr.bf16.mxu0 0
    %436 = vmatpush1.bf16.msra.mxu0 %v412
    %437 = vmatprep.subr.bf16.mxu0 0
    %438 = vmatpush1.bf16.msra.mxu0 0
    %439 = vmatprep.subr.bf16.mxu0 0
    %440 = vmatpush1.bf16.msra.mxu0 0
    %441 = vmatprep.subr.bf16.mxu0 0
    %442 = vmatpush1.bf16.msra.mxu0 0
    %443 = vmatprep.subr.bf16.mxu0 0
    %444 = vmatpush1.bf16.msra.mxu0 0
    %445 = vmatprep.subr.bf16.mxu0 0
    %446 = vmatpush1.bf16.msra.mxu0 0
    %447 = vmatprep.subr.bf16.mxu0 0
    %448 = vmatpush1.bf16.msra.mxu0 0
    %449 = vmatprep.subr.bf16.mxu0 0
    %450 = vmatpush1.bf16.msra.mxu0 0
    %451 = vmatprep.subr.bf16.mxu0 0
    %452 = vmatpush1.bf16.msra.mxu0 0
    %453 = vmatprep.mubr.bf16.mxu0 0
    %454 = vmatmul.mubr.bf16.gmra.mrb[0].mxu0 %v349
    %v455 = vpop.f32.mrb[0].mxu0
    %v456 = vadd.f32 %v371, %v455
    %v457 = vpop.f32.mrb[0].mxu0
    %v458 = vpop.f32.mrb[0].mxu0
    %v459 = vpop.f32.mrb[0].mxu0
    %460 = vdwg.mxu0
    %461 = vmax.xlane.f32.xlu0 %v456
    %v462 = vpop.xlane.xlu0 %461
    %v463 = vsub.f32 %v456, %v462
    %v464 = vmul.f32 %v463, 1.442695
    %v465 = vpow.pop %v464
    %466 = vadd.xlane.f32.xlu0 %v465
    %v467 = vpop.xlane.xlu0 %466
    %v468 = vlog2.pop %v467
    %v469 = vmul.f32 %v468, 0.6931472
    %v470 = vsub.f32 %v463, %v469
    %471 = vst [vmem:[#allocation7] sm:$0xff] %v470
    // Predicated region
    $region38: #{model_a_forward.1} parent=1 // pred_check
      _
    $region39: #{model_a_forward.1} parent=1 // pred_check_branch
      %473 = sbr.rel (0) target = $region41
    $region40: #{model_a_forward.1} parent=1 // pred_region
      %s475 = ssub.s32 128, 128
      %476 = vsyncadd [#allocation4], %s475
      %s478 = sshll.u32 [#allocation7], 4
      %s479 = int_to_ptr.vmem [resolvable:$true] %s478
      %481 = dma.vmem_to_hbm [thread:$0]  %s479, 128, %s7, [#allocation4]
    $region41: #{model_a_forward.1} parent=1 // pred_fallthru
      _
    // Predicated region
    $region42: #{model_a_forward.1} parent=1 // pred_check
      _
    $region43: #{model_a_forward.1} parent=1 // pred_check_branch
      %483 = sbr.rel (0) target = $region45
    $region44: #{model_a_forward.1} parent=1 // pred_region
      %484 = dma.done [#allocation4], 128
    $region45: #{model_a_forward.1} parent=1 // pred_fallthru
      _
    %485 = vsyncpa [#allocation3], 1
    %486 = vsyncpa [#allocation6], 1
    %487 = vsyncpa [#allocation4], 1

</llo_original>
